<compile_context>
chip_gen: v7x
topology: tpu7x:2x2x1
jax: 0.10.0
libtpu: 0.0.40
codegen_flags: <defaults>
</compile_context>

<pallas_src>
import functools

import jax
import jax.numpy as jnp
from jax import lax
from jax.experimental import pallas as pl
from jax.experimental.pallas import tpu as pltpu


def _round_up(v, m):
    return ((v + m - 1) // m) * m


# ----------------------------- Pallas kernel -------------------------------

def _gemm_bias_act_kernel(p_ref, w_ref, b_ref, o_ref, *, act):
    # p_ref: (TM, K)      bf16 im2col patch tile
    # w_ref: (K, Coutp)   bf16 BN-scale-folded weights (resident block)
    # b_ref: (1, Coutp)   f32 BN folded bias (resident block)
    # o_ref: (TM, Coutp)  output tile (bf16), lane-dense
    acc = jnp.dot(p_ref[...], w_ref[...], preferred_element_type=jnp.float32)
    y = acc + b_ref[...]                       # f32 epilogue
    if act == "relu":
        y = jnp.maximum(y, 0.0)
    elif act == "hard_swish":
        y = y * jnp.clip(y + 3.0, 0.0, 6.0) * (1.0 / 6.0)
    elif act is not None:
        raise ValueError(f"unknown act: {act}")
    o_ref[...] = y.astype(o_ref.dtype)


# ------------------------------- Wrapper ------------------------------------

def conv_bn_act(x_nchw, weight, bn_gamma, bn_beta, bn_mean, bn_var, *,
                stride=1, padding=0, groups=1, act=None, eps=1e-5,
                compute_dtype=jnp.bfloat16, out_dtype=jnp.bfloat16,
                tile_m=1024):
    """ConvBNACT forward (inference BN). x: (N,Cin,H,W), weight: (Cout,Cin,kh,kw)."""
    assert groups == 1, "TODO(synk): groups > 1 / depthwise not implemented"
    N, Cin, H, W = x_nchw.shape
    Cout, Cin_w, kh, kw = weight.shape
    assert Cin == Cin_w
    s, p = stride, padding
    Ho = (H + 2 * p - kh) // s + 1
    Wo = (W + 2 * p - kw) // s + 1
    M = N * Ho * Wo
    K = Cin * kh * kw

    # ---- fold BN (inference) into the weights + a per-channel bias ----
    scale = (bn_gamma / jnp.sqrt(bn_var + eps)).astype(jnp.float32)
    bias = bn_beta.astype(jnp.float32) - bn_mean.astype(jnp.float32) * scale
    w_folded = weight.astype(jnp.float32) * scale[:, None, None, None]

    # ---- lane-dense Cout padding + (K, Coutp) weight matrix ----
    # TODO(synk): round Coutp / K tiling to 256 on v6e/v7x when Cout >= 256.
    Coutp = _round_up(Cout, 128)
    w_mat = w_folded.reshape(Cout, K).T                       # (K, Cout), (Cin,kh,kw) C-order
    w_mat = jnp.pad(w_mat, ((0, 0), (0, Coutp - Cout))).astype(compute_dtype)
    bias_p = jnp.pad(bias, (0, Coutp - Cout)).reshape(1, Coutp)

    # ---- one NCHW->NHWC transpose + spatial zero-pad + space-to-depth im2col
    #      (done once in XLA; the kernel then sees a plain dense GEMM) ----
    x_nhwc = jnp.transpose(x_nchw, (0, 2, 3, 1)).astype(compute_dtype)
    x_pad = jnp.pad(x_nhwc, ((0, 0), (p, p), (p, p), (0, 0)))
    taps = []
    for dy in range(kh):
        for dx in range(kw):
            taps.append(lax.slice(
                x_pad, (0, dy, dx, 0),
                (N, dy + s * (Ho - 1) + 1, dx + s * (Wo - 1) + 1, Cin),
                (1, s, s, 1)))                                # (N, Ho, Wo, Cin)
    patches = jnp.stack(taps, axis=-1)                        # (N, Ho, Wo, Cin, kh*kw)
    patches = patches.reshape(M, K)                           # K order == weight reshape order

    # ---- generation-aware VMEM budget + TM tile selection ----
    try:
        vmem_cap = int(pltpu.get_tpu_info().vmem_capacity_bytes)
    except Exception:
        vmem_cap = 64 * 1024 * 1024                           # conservative (v7x)
    vmem_budget = int(0.75 * vmem_cap)                        # headroom for compiler scratch

    itm_in = jnp.dtype(compute_dtype).itemsize
    itm_out = jnp.dtype(out_dtype).itemsize
    Kl = _round_up(K, 128)                                    # lane-padded K in VMEM

    def vmem_est(tm):
        return (2 * tm * Kl * itm_in                          # patch tile, double-buffered
                + 2 * _round_up(K, 16) * Coutp * itm_in       # resident weights (2 bufs)
                + 2 * 8 * Coutp * 4                           # resident bias
                + 2 * tm * Coutp * itm_out                    # out tile, double-buffered
                + tm * Coutp * 4)                             # f32 accumulator / epilogue

    tm = max(8, _round_up(min(tile_m, _round_up(M, 8)), 8))
    while tm > 8 and vmem_est(tm) > vmem_budget:
        tm = max(8, _round_up(tm // 2, 8))

    Mp = _round_up(M, tm)
    patches = jnp.pad(patches, ((0, Mp - M), (0, 0)))
    grid_m = Mp // tm

    flops = 2 * Mp * K * Coutp
    bytes_accessed = (patches.size * itm_in + w_mat.size * itm_in
                      + bias_p.size * 4 + Mp * Coutp * itm_out)
    cost = pl.CostEstimate(flops=flops, transcendentals=0,
                           bytes_accessed=bytes_accessed)
    vmem_limit = int(min(vmem_budget, max(32 * 1024 * 1024, 2 * vmem_est(tm))))

    kernel = functools.partial(_gemm_bias_act_kernel, act=act)

    out2d = pl.pallas_call(
        kernel,
        out_shape=jax.ShapeDtypeStruct((Mp, Coutp), out_dtype),
        grid_spec=pltpu.PrefetchScalarGridSpec(
            num_scalar_prefetch=0,
            grid=(grid_m,),
            in_specs=[
                pl.BlockSpec((tm, K), lambda i: (i, 0)),
                # constant index_maps -> weight / bias blocks stay resident
                pl.BlockSpec((K, Coutp), lambda i: (0, 0)),
                pl.BlockSpec((1, Coutp), lambda i: (0, 0)),
            ],
            out_specs=pl.BlockSpec((tm, Coutp), lambda i: (i, 0)),
        ),
        compiler_params=pltpu.CompilerParams(
            dimension_semantics=("parallel",),
            vmem_limit_bytes=vmem_limit),
        cost_estimate=cost,
    )(patches, w_mat, bias_p)

    out = out2d[:M, :Cout].reshape(N, Ho, Wo, Cout)
    # TODO(synk): keep NHWC / padded-Cout output when the surrounding graph
    # permits to skip this slice + transpose (an extra HBM round-trip).
    return jnp.transpose(out, (0, 3, 1, 2))                   # back to NCHW


# ------------------------------- Example ------------------------------------

if __name__ == "__main__":
    key = jax.random.PRNGKey(0)
    k_x, k_w, k_g, k_b, k_m, k_v = jax.random.split(key, 6)

    # ConvBNACT(in=4, out=8, kernel=3, stride=1, pad=1, act='hard_swish')
    N, Cin, H, W = 2, 4, 16, 16
    Cout, ksz, stride, pad = 8, 3, 1, 1
    act = "hard_swish"
    eps = 1e-5

    x = jax.random.normal(k_x, (N, Cin, H, W), dtype=jnp.float32)
    weight = jax.random.normal(k_w, (Cout, Cin, ksz, ksz), dtype=jnp.float32) * 0.1
    gamma = jax.random.normal(k_g, (Cout,), dtype=jnp.float32) * 0.1 + 1.0
    beta = jax.random.normal(k_b, (Cout,), dtype=jnp.float32) * 0.1
    mean = jax.random.normal(k_m, (Cout,), dtype=jnp.float32) * 0.1
    var = jax.nn.softplus(jax.random.normal(k_v, (Cout,), dtype=jnp.float32)) + 0.5

    out = conv_bn_act(x, weight, gamma, beta, mean, var,
                      stride=stride, padding=pad, act=act, eps=eps,
                      tile_m=256)   # small tile so the example exercises >1 grid step
    out = jax.block_until_ready(out)

    # Reference: identical bf16 operand quantization (BN scale folded into the
    # weights), f32 accumulation via HIGHEST-precision conv.  The kernel emits
    # bf16, so tolerances are bf16-output-rounding sized.
    scale = gamma / jnp.sqrt(var + eps)
    bias = beta - mean * scale
    xq = x.astype(jnp.bfloat16).astype(jnp.float32)
    wq = (weight * scale[:, None, None, None]).astype(jnp.bfloat16).astype(jnp.float32)
    ref = lax.conv_general_dilated(
        xq, wq, window_strides=(stride, stride),
        padding=[(pad, pad), (pad, pad)],
        dimension_numbers=("NCHW", "OIHW", "NCHW"),
        precision=lax.Precision.HIGHEST)
    ref = ref + bias.reshape(1, Cout, 1, 1)
    ref = ref * jnp.clip(ref + 3.0, 0.0, 6.0) * (1.0 / 6.0)

    assert out.shape == (N, Cout, H, W), out.shape
    out_f32 = out.astype(jnp.float32)
    max_err = float(jnp.max(jnp.abs(out_f32 - ref)))
    assert jnp.allclose(out_f32, ref, atol=2e-2, rtol=2e-2), max_err

    print("KERNEL_OK")
</pallas_src>

<mosaic_0001>
module attributes {stable_mosaic.version = 11 : i64} {
  func.func @_gemm_bias_act_kernel(%arg0: i32, %arg1: memref<256x36xbf16, #tpu.memory_space<vmem>>, %arg2: memref<36x128xbf16, #tpu.memory_space<vmem>>, %arg3: memref<1x128xf32, #tpu.memory_space<vmem>>, %arg4: memref<256x128xbf16, #tpu.memory_space<vmem>>) attributes {dimension_semantics = [#tpu.dimension_semantics<parallel>], iteration_bounds = array<i64: 2>, scalar_prefetch = 0 : i64, scratch_operands = 0 : i64, tpu.core_type = #tpu.core_type<tc>, window_params = [{transform_indices = @transform_0, window_bounds = array<i64: 256, 36>}, {pipeline_mode = #tpu.pipeline_mode<synchronous>, transform_indices = @transform_1, window_bounds = array<i64: 36, 128>}, {pipeline_mode = #tpu.pipeline_mode<synchronous>, transform_indices = @transform_2, window_bounds = array<i64: 1, 128>}, {transform_indices = @transform_3, window_bounds = array<i64: 256, 128>}]} {
    %c0 = arith.constant 0 : index
    %c0_0 = arith.constant 0 : index
    %0 = vector.load %arg1[%c0, %c0_0] : memref<256x36xbf16, #tpu.memory_space<vmem>>, vector<256x36xbf16>
    %c0_1 = arith.constant 0 : index
    %c0_2 = arith.constant 0 : index
    %1 = vector.load %arg2[%c0_1, %c0_2] : memref<36x128xbf16, #tpu.memory_space<vmem>>, vector<36x128xbf16>
    %cst = arith.constant dense<0.000000e+00> : vector<256x128xf32>
    %2 = tpu.matmul %0, %1, %cst {dimension_numbers = #tpu.dot_dimension_numbers<[1], [0], [0], [1], [0, 0, 1, 1], [], []>} : vector<256x36xbf16>, vector<36x128xbf16>, vector<256x128xf32> -> vector<256x128xf32>
    %c0_3 = arith.constant 0 : index
    %c0_4 = arith.constant 0 : index
    %3 = vector.load %arg3[%c0_3, %c0_4] : memref<1x128xf32, #tpu.memory_space<vmem>>, vector<1x128xf32>
    %4 = vector.broadcast %3 : vector<1x128xf32> to vector<256x128xf32>
    %5 = arith.addf %2, %4 : vector<256x128xf32>
    %cst_5 = arith.constant 3.000000e+00 : f32
    %6 = vector.broadcast %cst_5 : f32 to vector<256x128xf32>
    %7 = arith.addf %5, %6 : vector<256x128xf32>
    %cst_6 = arith.constant 0.000000e+00 : f32
    %cst_7 = arith.constant 6.000000e+00 : f32
    %8 = vector.broadcast %cst_6 : f32 to vector<256x128xf32>
    %9 = arith.maximumf %8, %7 : vector<256x128xf32>
    %10 = vector.broadcast %cst_7 : f32 to vector<256x128xf32>
    %11 = arith.minimumf %10, %9 : vector<256x128xf32>
    %12 = arith.mulf %5, %11 : vector<256x128xf32>
    %cst_8 = arith.constant 0.166666672 : f32
    %13 = vector.broadcast %cst_8 : f32 to vector<256x128xf32>
    %14 = arith.mulf %12, %13 : vector<256x128xf32>
    %15 = arith.truncf %14 : vector<256x128xf32> to vector<256x128xbf16>
    %c0_9 = arith.constant 0 : index
    %c0_10 = arith.constant 0 : index
    %16 = vector.load %arg4[%c0_9, %c0_10] : memref<256x128xbf16, #tpu.memory_space<vmem>>, vector<256x128xbf16>
    tpu.vector_store %arg4[%c0_9, %c0_10], %15 {strides = array<i32>} : memref<256x128xbf16, #tpu.memory_space<vmem>>, vector<256x128xbf16>,
    return
  }
  func.func @transform_0(%arg0: i32) -> (i32, i32) {
    %c0_i32 = arith.constant 0 : i32
    %c0_i32_0 = arith.constant 0 : i32
    return %arg0, %c0_i32 : i32, i32
  }
  func.func @transform_1(%arg0: i32) -> (i32, i32) {
    %c0_i32 = arith.constant 0 : i32
    %c0_i32_0 = arith.constant 0 : i32
    %c0_i32_1 = arith.constant 0 : i32
    return %c0_i32, %c0_i32_0 : i32, i32
  }
  func.func @transform_2(%arg0: i32) -> (i32, i32) {
    %c0_i32 = arith.constant 0 : i32
    %c0_i32_0 = arith.constant 0 : i32
    %c0_i32_1 = arith.constant 0 : i32
    return %c0_i32, %c0_i32_0 : i32, i32
  }
  func.func @transform_3(%arg0: i32) -> (i32, i32) {
    %c0_i32 = arith.constant 0 : i32
    %c0_i32_0 = arith.constant 0 : i32
    return %arg0, %c0_i32 : i32, i32
  }
}

</mosaic_0001>

<llo_original>
// kernel: tpu_custom_call.1
$region0: #{tpu_custom_call.1}
  #allocation0 [shape = 'u32[]', space=smem, size = 0x4, offset = 0x4, fixed_abs, tag = 'smem constant byte address 0x4 - core index']
  #allocation1 [shape = 'u32[144,128]{1,0:T(1,128)}', space=vmem, size = 0x12000, scoped, tag = 'internal scratch']
  %s0 = inlined_call_operand.vmem [shape: bf16[512,36], index: 0, kind: input, shape index: {}]
  %s1 = inlined_call_operand.vmem [shape: bf16[36,128], index: 1, kind: input, shape index: {}]
  %s2 = inlined_call_operand.vmem [shape: f32[1,128], index: 2, kind: input, shape index: {}]
  %s3 = inlined_call_operand.hbm [shape: bf16[512,128], index: 3, kind: output, shape index: {}]
  %s4 = sld [smem:[#allocation0]]
  $region45: #{tpu_custom_call.1} parent=0
    _
  %s6 = ssub.s32 1, %s4
  %s7 = scalar_select 0, %s6, %s4
  $region1: #{tpu_custom_call.1} parent=0
    #allocation2 [shape = 'u8[131072]{0}', space=vmem, size = 0x20000, scoped, tag = 'output window, operand 0']
    #allocation3 [shape = 's32[2]{0}', space=sflag, size = 0x8, scoped, tag = 'scoped memory for tpu_custom_call.1']
    %8 = vsyncpa [#allocation3], 0
    %s9 = scalar_lea.sflag [#allocation3], 1
    %10 = vsyncpa %s9, 0
    loop: start=0, step=1, limit=4
    $region2: #{tpu_custom_call.1} parent=1 // loop_pre_header
      _
    $region3: #{tpu_custom_call.1} parent=1 // loop_header
      %s12 = sphi 0, %s16
      %p13 = scmp.ge.s32.totalorder %s12, 4
      %s22 = sphi 0, %s24
      %s25 = sphi 0, %s22
      %s26 = sphi 0, %s25
      %s42 = sphi 0, %s26
      %s46 = sphi 0, %s46
      %s48 = sphi 0, %s46
      %s49 = sphi 0, %s48
      %s63 = sphi 0, %s49
      %s67 = sphi 0, %s67
      %s69 = sphi 0, %s67
      %s70 = sphi 0, %s69
      %s84 = sphi 0, %s70
      %s90 = sphi 0, %s92
      %s93 = sphi 0, %s90
      %s94 = sphi 0, %s93
      %s110 = sphi 0, %s94
    $region4: #{tpu_custom_call.1} parent=1 // loop_header_branch
      %15 = sbr.rel (%p13) target = $region8
    $region5: #{tpu_custom_call.1} parent=1 // loop_body
      %s17 = ssub.s32 %s12, 1
      %s18 = ssub.s32 %s12, 2
      %s19 = sadd.s32 %s12, 1
      %s20 = ssub.s32 %s12, %s19
      %p21 = scmp.eq.s32.totalorder %s20, 0
      %s23 = sadd.s32 %s22, 1
      %s24 = scalar_select %p21, %s22, %s23
      %p27 = pneg %p21
      %p28 = scmp.eq.s32.totalorder %s12, 1
      %p29 = por %p27, %p28
      %p30 = scmp.ne.s32.totalorder %s22, %s25
      %p31 = scmp.eq.s32.totalorder %s12, 0
      %p32 = por %p30, %p31
      %p33 = scmp.ne.s32.totalorder %s22, %s25
      %p34 = scmp.eq.s32.totalorder %s17, 1
      %p35 = por %p33, %p34
      %p36 = scmp.ne.s32.totalorder %s25, %s26
      %p37 = scmp.eq.s32.totalorder %s17, 0
      %p38 = por %p36, %p37
      %p39 = scmp.ne.s32.totalorder %s25, %s26
      %p40 = scmp.eq.s32.totalorder %s18, 1
      %p41 = por %p39, %p40
      %p43 = scmp.ne.s32.totalorder %s26, %s42
      %p44 = scmp.eq.s32.totalorder %s18, 0
      %p45 = por %p43, %p44
      %s47 = sadd.s32 %s46, 1
      %p50 = scmp.eq.s32.totalorder %s12, 1
      %p51 = scmp.ne.s32.totalorder %s46, %s48
      %p52 = scmp.eq.s32.totalorder %s12, 0
      %p53 = por %p51, %p52
      %p54 = scmp.ne.s32.totalorder %s46, %s48
      %p55 = scmp.eq.s32.totalorder %s17, 1
      %p56 = por %p54, %p55
      %p57 = scmp.ne.s32.totalorder %s48, %s49
      %p58 = scmp.eq.s32.totalorder %s17, 0
      %p59 = por %p57, %p58
      %p60 = scmp.ne.s32.totalorder %s48, %s49
      %p61 = scmp.eq.s32.totalorder %s18, 1
      %p62 = por %p60, %p61
      %p64 = scmp.ne.s32.totalorder %s49, %s63
      %p65 = scmp.eq.s32.totalorder %s18, 0
      %p66 = por %p64, %p65
      %s68 = sadd.s32 %s67, 1
      %p71 = scmp.eq.s32.totalorder %s12, 1
      %p72 = scmp.ne.s32.totalorder %s67, %s69
      %p73 = scmp.eq.s32.totalorder %s12, 0
      %p74 = por %p72, %p73
      %p75 = scmp.ne.s32.totalorder %s67, %s69
      %p76 = scmp.eq.s32.totalorder %s17, 1
      %p77 = por %p75, %p76
      %p78 = scmp.ne.s32.totalorder %s69, %s70
      %p79 = scmp.eq.s32.totalorder %s17, 0
      %p80 = por %p78, %p79
      %p81 = scmp.ne.s32.totalorder %s69, %s70
      %p82 = scmp.eq.s32.totalorder %s18, 1
      %p83 = por %p81, %p82
      %p85 = scmp.ne.s32.totalorder %s70, %s84
      %p86 = scmp.eq.s32.totalorder %s18, 0
      %p87 = por %p85, %p86
      %s88 = ssub.s32 %s12, %s19
      %p89 = scmp.eq.s32.totalorder %s88, 0
      %s91 = sadd.s32 %s90, 1
      %s92 = scalar_select %p89, %s90, %s91
      %p95 = pneg %p89
      %p96 = scmp.eq.s32.totalorder %s12, 1
      %p97 = por %p95, %p96
      %p98 = scmp.ne.s32.totalorder %s90, %s93
      %p99 = scmp.eq.s32.totalorder %s12, 0
      %p100 = por %p98, %p99
      %p101 = scmp.ne.s32.totalorder %s90, %s93
      %p102 = scmp.eq.s32.totalorder %s17, 1
      %p103 = por %p101, %p102
      %p104 = scmp.ne.s32.totalorder %s93, %s94
      %p105 = scmp.eq.s32.totalorder %s17, 0
      %p106 = por %p104, %p105
      %p107 = scmp.ne.s32.totalorder %s93, %s94
      %p108 = scmp.eq.s32.totalorder %s18, 1
      %p109 = por %p107, %p108
      %p111 = scmp.ne.s32.totalorder %s94, %s110
      %p112 = scmp.eq.s32.totalorder %s18, 0
      %p113 = por %p111, %p112
      %p114 = scmp.le.s32.totalorder 1, %s12
      %p115 = scmp.lt.s32.totalorder %s12, 3
      %p116 = pnand %p114, %p115
      %p117 = pneg %p116
      // Predicated region
      $region9: #{tpu_custom_call.1} parent=5 // pred_check
        _
      $region10: #{tpu_custom_call.1} parent=5 // pred_check_branch
        %119 = sbr.rel (%p116) target = $region12
      $region11: #{tpu_custom_call.1} parent=5 // pred_region
        %s120 = ssub.s32 %s12, 1
        // Predicated region
        $region13: #{tpu_custom_call.1} parent=11 // pred_check
          %p121 = pneg %p59
        $region14: #{tpu_custom_call.1} parent=11 // pred_check_branch
          %123 = sbr.rel (%p121) target = $region16
        $region15: #{tpu_custom_call.1} parent=11 // pred_region
          _
        $region16: #{tpu_custom_call.1} parent=11 // pred_fallthru
          _
        // Predicated region
        $region17: #{tpu_custom_call.1} parent=11 // pred_check
          %p124 = pneg %p80
        $region18: #{tpu_custom_call.1} parent=11 // pred_check_branch
          %126 = sbr.rel (%p124) target = $region20
        $region19: #{tpu_custom_call.1} parent=11 // pred_region
          _
        $region20: #{tpu_custom_call.1} parent=11 // pred_fallthru
          _
      $region12: #{tpu_custom_call.1} parent=5 // pred_fallthru
        _
      %p127 = scmp.lt.s32.totalorder %s12, 2
      // Predicated region
      $region21: #{tpu_custom_call.1} parent=5 // pred_check
        %p128 = pneg %p127
      $region22: #{tpu_custom_call.1} parent=5 // pred_check_branch
        %130 = sbr.rel (%p128) target = $region24
      $region23: #{tpu_custom_call.1} parent=5 // pred_region
        // Predicated region
        $region25: #{tpu_custom_call.1} parent=23 // pred_check
          %p131 = pneg %p32
        $region26: #{tpu_custom_call.1} parent=23 // pred_check_branch
          %133 = sbr.rel (%p131) target = $region28
        $region27: #{tpu_custom_call.1} parent=23 // pred_region
          %s134 = smul.u32 32, %s12
          %p135 = scmp.lt.s32.totalorder %s134, 63
          %s136 = scalar_select %p135, %s134, 63
          %s137 = smul.addr %s136, 4
          %s138 = scalar_lea.vmem %s0, %s137
          %s139 = smul.u32 32, %s12
        $region28: #{tpu_custom_call.1} parent=23 // pred_fallthru
          _
      $region24: #{tpu_custom_call.1} parent=5 // pred_fallthru
        _
      %p140 = scmp.le.s32.totalorder 1, %s12
      %p141 = scmp.lt.s32.totalorder %s12, 3
      %p142 = pnand %p140, %p141
      %p143 = pneg %p142
      // Predicated region
      $region29: #{tpu_custom_call.1} parent=5 // pred_check
        _
      $region30: #{tpu_custom_call.1} parent=5 // pred_check_branch
        %145 = sbr.rel (%p142) target = $region32
      $region31: #{tpu_custom_call.1} parent=5 // pred_region
        %s146 = ssub.s32 %s12, 1
        %s147 = smul.u32 32, %s17
        %p148 = scmp.lt.s32.totalorder %s147, 63
        %s149 = scalar_select %p148, %s147, 63
        %s150 = smul.addr %s149, 4
        %s151 = scalar_lea.vmem %s0, %s150
        %p152 = pneg %p38
        %p153 = pneg %p35
        %p154 = pneg %p59
        %p155 = pneg %p56
        %p156 = pneg %p80
        %p157 = pneg %p77
        %p158 = pneg %p106
        %p159 = pneg %p103
        %s160 = sand.u32 %s93, 1
        %s161 = scalar_lea.sflag [#allocation3], %s160
        %s162 = sand.u32 %s93, 1
        %s163 = smul.addr %s162, 128
        %s164 = scalar_lea.vmem [#allocation2], %s163
        %s165 = smul.u32 32, %s17
        %p166 = scmp.lt.s32.totalorder %s165, 63
        %s167 = scalar_select %p166, %s165, 63
        %s168 = smul.addr %s167, 4
        %s169 = scalar_lea.vmem %s0, %s168
        %s170 = smul.u32 32, %s17
        %s171 = smul.u32 32, %s17
        %v173 = vld [vmem:[%s169] sm:$0xf]
        %v174 = vld [vmem:[%s169 + $0x4] sm:$0xf]
        %v175 = vld [vmem:[%s169 + $0x8] sm:$0xf]
        %v176 = vld [vmem:[%s169 + $0xc] sm:$0xf]
        %v177 = vld [vmem:[%s169 + $0x10] sm:$0xf]
        %v178 = vld [vmem:[%s169 + $0x14] sm:$0xf]
        %v179 = vld [vmem:[%s169 + $0x18] sm:$0xf]
        %v180 = vld [vmem:[%s169 + $0x1c] sm:$0xf]
        %v181 = vld [vmem:[%s169 + $0x20] sm:$0xf]
        %v182 = vld [vmem:[%s169 + $0x24] sm:$0xf]
        %v183 = vld [vmem:[%s169 + $0x28] sm:$0xf]
        %v184 = vld [vmem:[%s169 + $0x2c] sm:$0xf]
        %v185 = vld [vmem:[%s169 + $0x30] sm:$0xf]
        %v186 = vld [vmem:[%s169 + $0x34] sm:$0xf]
        %v187 = vld [vmem:[%s169 + $0x38] sm:$0xf]
        %v188 = vld [vmem:[%s169 + $0x3c] sm:$0xf]
        %v189 = vld [vmem:[%s169 + $0x40] sm:$0xf]
        %v190 = vld [vmem:[%s169 + $0x44] sm:$0xf]
        %v191 = vld [vmem:[%s169 + $0x48] sm:$0xf]
        %v192 = vld [vmem:[%s169 + $0x4c] sm:$0xf]
        %v193 = vld [vmem:[%s169 + $0x50] sm:$0xf]
        %v194 = vld [vmem:[%s169 + $0x54] sm:$0xf]
        %v195 = vld [vmem:[%s169 + $0x58] sm:$0xf]
        %v196 = vld [vmem:[%s169 + $0x5c] sm:$0xf]
        %v197 = vld [vmem:[%s169 + $0x60] sm:$0xf]
        %v198 = vld [vmem:[%s169 + $0x64] sm:$0xf]
        %v199 = vld [vmem:[%s169 + $0x68] sm:$0xf]
        %v200 = vld [vmem:[%s169 + $0x6c] sm:$0xf]
        %v201 = vld [vmem:[%s169 + $0x70] sm:$0xf]
        %v202 = vld [vmem:[%s169 + $0x74] sm:$0xf]
        %v203 = vld [vmem:[%s169 + $0x78] sm:$0xf]
        %v204 = vld [vmem:[%s169 + $0x7c] sm:$0xf]
        %v205 = vld [vmem:[%s1] sm:$0xf]
        %v206 = vld [vmem:[%s1 + $0x4] sm:$0xf]
        %v207 = vld [vmem:[%s1 + $0x8] sm:$0xf]
        %v208 = vld [vmem:[%s1 + $0xc] sm:$0xf]
        %v209 = vld [vmem:[%s1 + $0x10] sm:$0x3]
        %v210 = vld [vmem:[%s2] sm:$0x1]
        %v212 = vlaneseq
        %v213 = vshrl.u32 %v212, 7
        %v214 = vsub.s32 0, %v213
        %v215 = vrot.slane %v210, %v214
        %v249 = vunpack.c.l.b16 %v173
        %v250 = vunpack.c.l.b16 %v174
        %v251 = vunpack.c.l.b16 %v175
        %v252 = vunpack.c.l.b16 %v176
        %v253 = vunpack.c.l.b16 %v177
        %v254 = vunpack.c.l.b16 %v178
        %v255 = vunpack.c.l.b16 %v179
        %v256 = vunpack.c.l.b16 %v180
        %v257 = vunpack.c.l.b16 %v181
        %v258 = vunpack.c.l.b16 %v182
        %v259 = vunpack.c.l.b16 %v183
        %v260 = vunpack.c.l.b16 %v184
        %v261 = vunpack.c.l.b16 %v185
        %v262 = vunpack.c.l.b16 %v186
        %v263 = vunpack.c.l.b16 %v187
        %v264 = vunpack.c.l.b16 %v188
        %v265 = vunpack.c.l.b16 %v189
        %v266 = vunpack.c.l.b16 %v190
        %v267 = vunpack.c.l.b16 %v191
        %v268 = vunpack.c.l.b16 %v192
        %v269 = vunpack.c.l.b16 %v193
        %v270 = vunpack.c.l.b16 %v194
        %v271 = vunpack.c.l.b16 %v195
        %v272 = vunpack.c.l.b16 %v196
        %v273 = vunpack.c.l.b16 %v197
        %v274 = vunpack.c.l.b16 %v198
        %v275 = vunpack.c.l.b16 %v199
        %v276 = vunpack.c.l.b16 %v200
        %v277 = vunpack.c.l.b16 %v201
        %v278 = vunpack.c.l.b16 %v202
        %v279 = vunpack.c.l.b16 %v203
        %v280 = vunpack.c.l.b16 %v204
        %v281 = vpack.c.b16 %v250, %v249
        %v282 = vpack.c.b16 %v252, %v251
        %v283 = vpack.c.b16 %v254, %v253
        %v284 = vpack.c.b16 %v256, %v255
        %v285 = vpack.c.b16 %v258, %v257
        %v286 = vpack.c.b16 %v260, %v259
        %v287 = vpack.c.b16 %v262, %v261
        %v288 = vpack.c.b16 %v264, %v263
        %v289 = vpack.c.b16 %v266, %v265
        %v290 = vpack.c.b16 %v268, %v267
        %v291 = vpack.c.b16 %v270, %v269
        %v292 = vpack.c.b16 %v272, %v271
        %v293 = vpack.c.b16 %v274, %v273
        %v294 = vpack.c.b16 %v276, %v275
        %v295 = vpack.c.b16 %v278, %v277
        %v296 = vpack.c.b16 %v280, %v279
        %v302 = vunpack.c.l.b16 %v205
        %v303 = vunpack.c.l.b16 %v206
        %v304 = vunpack.c.l.b16 %v207
        %v305 = vunpack.c.l.b16 %v208
        %v306 = vunpack.c.l.b16 %v209
        %v307 = vpack.c.b16 %v303, %v302
        %v308 = vpack.c.b16 %v305, %v304
        %v309 = vpack.c.b16 %v306, %v306
        %vm312 = vcmask 293888
        %v314 = vsel %vm312, %v281, 0
        %v317 = vsel %vm312, %v282, 0
        %v320 = vsel %vm312, %v283, 0
        %v323 = vsel %vm312, %v284, 0
        %v326 = vsel %vm312, %v285, 0
        %v329 = vsel %vm312, %v286, 0
        %v332 = vsel %vm312, %v287, 0
        %v335 = vsel %vm312, %v288, 0
        %v338 = vsel %vm312, %v289, 0
        %v341 = vsel %vm312, %v290, 0
        %v344 = vsel %vm312, %v291, 0
        %v347 = vsel %vm312, %v292, 0
        %v350 = vsel %vm312, %v293, 0
        %v353 = vsel %vm312, %v294, 0
        %v356 = vsel %vm312, %v295, 0
        %v359 = vsel %vm312, %v296, 0
        %vm361 = vcmask 1041408
        %v363 = vsel %vm361, %v309, 0
        %365 = vmatprep.subr.bf16.mxu0 0
        %366 = vmatpush1.bf16.msra.mxu0 %v307
        %367 = vmatprep.subr.bf16.mxu0 0
        %368 = vmatpush1.bf16.msra.mxu0 %v308
        %369 = vmatprep.subr.bf16.mxu0 0
        %370 = vmatpush1.bf16.msra.mxu0 %v363
        %371 = vmatprep.subr.bf16.mxu0 0
        %372 = vmatpush1.bf16.msra.mxu0 0
        %373 = vmatprep.subr.bf16.mxu0 0
        %374 = vmatpush1.bf16.msra.mxu0 0
        %375 = vmatprep.subr.bf16.mxu0 0
        %376 = vmatpush1.bf16.msra.mxu0 0
        %377 = vmatprep.subr.bf16.mxu0 0
        %378 = vmatpush1.bf16.msra.mxu0 0
        %379 = vmatprep.subr.bf16.mxu0 0
        %380 = vmatpush1.bf16.msra.mxu0 0
        %381 = vmatprep.subr.bf16.mxu0 0
        %382 = vmatpush1.bf16.msra.mxu0 0
        %383 = vmatprep.subr.bf16.mxu0 0
        %384 = vmatpush1.bf16.msra.mxu0 0
        %385 = vmatprep.subr.bf16.mxu0 0
        %386 = vmatpush1.bf16.msra.mxu0 0
        %387 = vmatprep.subr.bf16.mxu0 0
        %388 = vmatpush1.bf16.msra.mxu0 0
        %389 = vmatprep.subr.bf16.mxu0 0
        %390 = vmatpush1.bf16.msra.mxu0 0
        %391 = vmatprep.subr.bf16.mxu0 0
        %392 = vmatpush1.bf16.msra.mxu0 0
        %393 = vmatprep.subr.bf16.mxu0 0
        %394 = vmatpush1.bf16.msra.mxu0 0
        %395 = vmatprep.subr.bf16.mxu0 0
        %396 = vmatpush1.bf16.msra.mxu0 0
        %397 = vmatprep.mubr.bf16.mxu0 0
        %398 = vmatmul.mubr.bf16.gmra.mrb[0].mxu0 %v314
        %v399 = vpop.f32.mrb[0].mxu0
        %v400 = vadd.f32 %v215, %v399
        %v401 = vpop.f32.mrb[0].mxu0
        %v402 = vpop.f32.mrb[0].mxu0
        %v403 = vadd.f32 %v215, %v402
        %v404 = vpop.f32.mrb[0].mxu0
        %405 = vmatprep.mubr.bf16.mxu0 0
        %406 = vmatmul.mubr.bf16.gmra.mrb[0].mxu0 %v317
        %v407 = vpop.f32.mrb[0].mxu0
        %v408 = vadd.f32 %v215, %v407
        %v409 = vpop.f32.mrb[0].mxu0
        %v410 = vpop.f32.mrb[0].mxu0
        %v411 = vadd.f32 %v215, %v410
        %v412 = vpop.f32.mrb[0].mxu0
        %413 = vmatprep.mubr.bf16.mxu0 0
        %414 = vmatmul.mubr.bf16.gmra.mrb[0].mxu0 %v320
        %v415 = vpop.f32.mrb[0].mxu0
        %v416 = vadd.f32 %v215, %v415
        %v417 = vpop.f32.mrb[0].mxu0
        %v418 = vpop.f32.mrb[0].mxu0
        %v419 = vadd.f32 %v215, %v418
        %v420 = vpop.f32.mrb[0].mxu0
        %421 = vmatprep.mubr.bf16.mxu0 0
        %422 = vmatmul.mubr.bf16.gmra.mrb[0].mxu0 %v323
        %v423 = vpop.f32.mrb[0].mxu0
        %v424 = vadd.f32 %v215, %v423
        %v425 = vpop.f32.mrb[0].mxu0
        %v426 = vpop.f32.mrb[0].mxu0
        %v427 = vadd.f32 %v215, %v426
        %v428 = vpop.f32.mrb[0].mxu0
        %429 = vmatprep.mubr.bf16.mxu0 0
        %430 = vmatmul.mubr.bf16.gmra.mrb[0].mxu0 %v326
        %v431 = vpop.f32.mrb[0].mxu0
        %v432 = vadd.f32 %v215, %v431
        %v433 = vpop.f32.mrb[0].mxu0
        %v434 = vpop.f32.mrb[0].mxu0
        %v435 = vadd.f32 %v215, %v434
        %v436 = vpop.f32.mrb[0].mxu0
        %437 = vmatprep.mubr.bf16.mxu0 0
        %438 = vmatmul.mubr.bf16.gmra.mrb[0].mxu0 %v329
        %v439 = vpop.f32.mrb[0].mxu0
        %v440 = vadd.f32 %v215, %v439
        %v441 = vpop.f32.mrb[0].mxu0
        %v442 = vpop.f32.mrb[0].mxu0
        %v443 = vadd.f32 %v215, %v442
        %v444 = vpop.f32.mrb[0].mxu0
        %445 = vmatprep.mubr.bf16.mxu0 0
        %446 = vmatmul.mubr.bf16.gmra.mrb[0].mxu0 %v332
        %v447 = vpop.f32.mrb[0].mxu0
        %v448 = vadd.f32 %v215, %v447
        %v449 = vpop.f32.mrb[0].mxu0
        %v450 = vpop.f32.mrb[0].mxu0
        %v451 = vadd.f32 %v215, %v450
        %v452 = vpop.f32.mrb[0].mxu0
        %453 = vmatprep.mubr.bf16.mxu0 0
        %454 = vmatmul.mubr.bf16.gmra.mrb[0].mxu0 %v335
        %v455 = vpop.f32.mrb[0].mxu0
        %v456 = vadd.f32 %v215, %v455
        %v457 = vpop.f32.mrb[0].mxu0
        %v458 = vpop.f32.mrb[0].mxu0
        %v459 = vadd.f32 %v215, %v458
        %v460 = vpop.f32.mrb[0].mxu0
        %461 = vmatprep.mubr.bf16.mxu0 0
        %462 = vmatmul.mubr.bf16.gmra.mrb[0].mxu0 %v338
        %v463 = vpop.f32.mrb[0].mxu0
        %v464 = vadd.f32 %v215, %v463
        %v465 = vpop.f32.mrb[0].mxu0
        %v466 = vpop.f32.mrb[0].mxu0
        %v467 = vadd.f32 %v215, %v466
        %v468 = vpop.f32.mrb[0].mxu0
        %469 = vmatprep.mubr.bf16.mxu0 0
        %470 = vmatmul.mubr.bf16.gmra.mrb[0].mxu0 %v341
        %v471 = vpop.f32.mrb[0].mxu0
        %v472 = vadd.f32 %v215, %v471
        %v473 = vpop.f32.mrb[0].mxu0
        %v474 = vpop.f32.mrb[0].mxu0
        %v475 = vadd.f32 %v215, %v474
        %v476 = vpop.f32.mrb[0].mxu0
        %477 = vmatprep.mubr.bf16.mxu0 0
        %478 = vmatmul.mubr.bf16.gmra.mrb[0].mxu0 %v344
        %v479 = vpop.f32.mrb[0].mxu0
        %v480 = vadd.f32 %v215, %v479
        %v481 = vpop.f32.mrb[0].mxu0
        %v482 = vpop.f32.mrb[0].mxu0
        %v483 = vadd.f32 %v215, %v482
        %v484 = vpop.f32.mrb[0].mxu0
        %485 = vmatprep.mubr.bf16.mxu0 0
        %486 = vmatmul.mubr.bf16.gmra.mrb[0].mxu0 %v347
        %v487 = vpop.f32.mrb[0].mxu0
        %v488 = vadd.f32 %v215, %v487
        %v489 = vpop.f32.mrb[0].mxu0
        %v490 = vpop.f32.mrb[0].mxu0
        %v491 = vadd.f32 %v215, %v490
        %v492 = vpop.f32.mrb[0].mxu0
        %493 = vmatprep.mubr.bf16.mxu0 0
        %494 = vmatmul.mubr.bf16.gmra.mrb[0].mxu0 %v350
        %v495 = vpop.f32.mrb[0].mxu0
        %v496 = vadd.f32 %v215, %v495
        %v497 = vpop.f32.mrb[0].mxu0
        %v498 = vpop.f32.mrb[0].mxu0
        %v499 = vadd.f32 %v215, %v498
        %v500 = vpop.f32.mrb[0].mxu0
        %501 = vmatprep.mubr.bf16.mxu0 0
        %502 = vmatmul.mubr.bf16.gmra.mrb[0].mxu0 %v353
        %v503 = vpop.f32.mrb[0].mxu0
        %v504 = vadd.f32 %v215, %v503
        %v505 = vpop.f32.mrb[0].mxu0
        %v506 = vpop.f32.mrb[0].mxu0
        %v507 = vadd.f32 %v215, %v506
        %v508 = vpop.f32.mrb[0].mxu0
        %509 = vmatprep.mubr.bf16.mxu0 0
        %510 = vmatmul.mubr.bf16.gmra.mrb[0].mxu0 %v356
        %v511 = vpop.f32.mrb[0].mxu0
        %v512 = vadd.f32 %v215, %v511
        %v513 = vpop.f32.mrb[0].mxu0
        %v514 = vpop.f32.mrb[0].mxu0
        %v515 = vadd.f32 %v215, %v514
        %v516 = vpop.f32.mrb[0].mxu0
        %517 = vmatprep.mubr.bf16.mxu0 0
        %518 = vmatmul.mubr.bf16.gmra.mrb[0].mxu0 %v359
        %v519 = vpop.f32.mrb[0].mxu0
        %v520 = vadd.f32 %v215, %v519
        %v521 = vpop.f32.mrb[0].mxu0
        %v522 = vpop.f32.mrb[0].mxu0
        %v523 = vadd.f32 %v215, %v522
        %v524 = vpop.f32.mrb[0].mxu0
        %525 = vdwg.mxu0
        %v526 = vadd.f32 %v400, 3.0
        %v527 = vadd.f32 %v403, 3.0
        %v528 = vadd.f32 %v408, 3.0
        %v529 = vadd.f32 %v411, 3.0
        %v530 = vadd.f32 %v416, 3.0
        %v531 = vadd.f32 %v419, 3.0
        %v532 = vadd.f32 %v424, 3.0
        %v533 = vadd.f32 %v427, 3.0
        %v534 = vadd.f32 %v432, 3.0
        %v535 = vadd.f32 %v435, 3.0
        %v536 = vadd.f32 %v440, 3.0
        %v537 = vadd.f32 %v443, 3.0
        %v538 = vadd.f32 %v448, 3.0
        %v539 = vadd.f32 %v451, 3.0
        %v540 = vadd.f32 %v456, 3.0
        %v541 = vadd.f32 %v459, 3.0
        %v542 = vadd.f32 %v464, 3.0
        %v543 = vadd.f32 %v467, 3.0
        %v544 = vadd.f32 %v472, 3.0
        %v545 = vadd.f32 %v475, 3.0
        %v546 = vadd.f32 %v480, 3.0
        %v547 = vadd.f32 %v483, 3.0
        %v548 = vadd.f32 %v488, 3.0
        %v549 = vadd.f32 %v491, 3.0
        %v550 = vadd.f32 %v496, 3.0
        %v551 = vadd.f32 %v499, 3.0
        %v552 = vadd.f32 %v504, 3.0
        %v553 = vadd.f32 %v507, 3.0
        %v554 = vadd.f32 %v512, 3.0
        %v555 = vadd.f32 %v515, 3.0
        %v556 = vadd.f32 %v520, 3.0
        %v557 = vadd.f32 %v523, 3.0
        %v558 = vmax.f32 %v526, 0.0
        %v559 = vmax.f32 %v527, 0.0
        %v560 = vmax.f32 %v528, 0.0
        %v561 = vmax.f32 %v529, 0.0
        %v562 = vmax.f32 %v530, 0.0
        %v563 = vmax.f32 %v531, 0.0
        %v564 = vmax.f32 %v532, 0.0
        %v565 = vmax.f32 %v533, 0.0
        %v566 = vmax.f32 %v534, 0.0
        %v567 = vmax.f32 %v535, 0.0
        %v568 = vmax.f32 %v536, 0.0
        %v569 = vmax.f32 %v537, 0.0
        %v570 = vmax.f32 %v538, 0.0
        %v571 = vmax.f32 %v539, 0.0
        %v572 = vmax.f32 %v540, 0.0
        %v573 = vmax.f32 %v541, 0.0
        %v574 = vmax.f32 %v542, 0.0
        %v575 = vmax.f32 %v543, 0.0
        %v576 = vmax.f32 %v544, 0.0
        %v577 = vmax.f32 %v545, 0.0
        %v578 = vmax.f32 %v546, 0.0
        %v579 = vmax.f32 %v547, 0.0
        %v580 = vmax.f32 %v548, 0.0
        %v581 = vmax.f32 %v549, 0.0
        %v582 = vmax.f32 %v550, 0.0
        %v583 = vmax.f32 %v551, 0.0
        %v584 = vmax.f32 %v552, 0.0
        %v585 = vmax.f32 %v553, 0.0
        %v586 = vmax.f32 %v554, 0.0
        %v587 = vmax.f32 %v555, 0.0
        %v588 = vmax.f32 %v556, 0.0
        %v589 = vmax.f32 %v557, 0.0
        %v590 = vmin.f32 %v558, 6.0
        %v591 = vmin.f32 %v559, 6.0
        %v592 = vmin.f32 %v560, 6.0
        %v593 = vmin.f32 %v561, 6.0
        %v594 = vmin.f32 %v562, 6.0
        %v595 = vmin.f32 %v563, 6.0
        %v596 = vmin.f32 %v564, 6.0
        %v597 = vmin.f32 %v565, 6.0
        %v598 = vmin.f32 %v566, 6.0
        %v599 = vmin.f32 %v567, 6.0
        %v600 = vmin.f32 %v568, 6.0
        %v601 = vmin.f32 %v569, 6.0
        %v602 = vmin.f32 %v570, 6.0
        %v603 = vmin.f32 %v571, 6.0
        %v604 = vmin.f32 %v572, 6.0
        %v605 = vmin.f32 %v573, 6.0
        %v606 = vmin.f32 %v574, 6.0
        %v607 = vmin.f32 %v575, 6.0
        %v608 = vmin.f32 %v576, 6.0
        %v609 = vmin.f32 %v577, 6.0
        %v610 = vmin.f32 %v578, 6.0
        %v611 = vmin.f32 %v579, 6.0
        %v612 = vmin.f32 %v580, 6.0
        %v613 = vmin.f32 %v581, 6.0
        %v614 = vmin.f32 %v582, 6.0
        %v615 = vmin.f32 %v583, 6.0
        %v616 = vmin.f32 %v584, 6.0
        %v617 = vmin.f32 %v585, 6.0
        %v618 = vmin.f32 %v586, 6.0
        %v619 = vmin.f32 %v587, 6.0
        %v620 = vmin.f32 %v588, 6.0
        %v621 = vmin.f32 %v589, 6.0
        %v622 = vmul.f32 %v400, %v590
        %v623 = vmul.f32 %v403, %v591
        %v624 = vmul.f32 %v408, %v592
        %v625 = vmul.f32 %v411, %v593
        %v626 = vmul.f32 %v416, %v594
        %v627 = vmul.f32 %v419, %v595
        %v628 = vmul.f32 %v424, %v596
        %v629 = vmul.f32 %v427, %v597
        %v630 = vmul.f32 %v432, %v598
        %v631 = vmul.f32 %v435, %v599
        %v632 = vmul.f32 %v440, %v600
        %v633 = vmul.f32 %v443, %v601
        %v634 = vmul.f32 %v448, %v602
        %v635 = vmul.f32 %v451, %v603
        %v636 = vmul.f32 %v456, %v604
        %v637 = vmul.f32 %v459, %v605
        %v638 = vmul.f32 %v464, %v606
        %v639 = vmul.f32 %v467, %v607
        %v640 = vmul.f32 %v472, %v608
        %v641 = vmul.f32 %v475, %v609
        %v642 = vmul.f32 %v480, %v610
        %v643 = vmul.f32 %v483, %v611
        %v644 = vmul.f32 %v488, %v612
        %v645 = vmul.f32 %v491, %v613
        %v646 = vmul.f32 %v496, %v614
        %v647 = vmul.f32 %v499, %v615
        %v648 = vmul.f32 %v504, %v616
        %v649 = vmul.f32 %v507, %v617
        %v650 = vmul.f32 %v512, %v618
        %v651 = vmul.f32 %v515, %v619
        %v652 = vmul.f32 %v520, %v620
        %v653 = vmul.f32 %v523, %v621
        %v654 = vmul.f32 %v622, 0.16666667
        %v655 = vmul.f32 %v623, 0.16666667
        %v656 = vmul.f32 %v624, 0.16666667
        %v657 = vmul.f32 %v625, 0.16666667
        %v658 = vmul.f32 %v626, 0.16666667
        %v659 = vmul.f32 %v627, 0.16666667
        %v660 = vmul.f32 %v628, 0.16666667
        %v661 = vmul.f32 %v629, 0.16666667
        %v662 = vmul.f32 %v630, 0.16666667
        %v663 = vmul.f32 %v631, 0.16666667
        %v664 = vmul.f32 %v632, 0.16666667
        %v665 = vmul.f32 %v633, 0.16666667
        %v666 = vmul.f32 %v634, 0.16666667
        %v667 = vmul.f32 %v635, 0.16666667
        %v668 = vmul.f32 %v636, 0.16666667
        %v669 = vmul.f32 %v637, 0.16666667
        %v670 = vmul.f32 %v638, 0.16666667
        %v671 = vmul.f32 %v639, 0.16666667
        %v672 = vmul.f32 %v640, 0.16666667
        %v673 = vmul.f32 %v641, 0.16666667
        %v674 = vmul.f32 %v642, 0.16666667
        %v675 = vmul.f32 %v643, 0.16666667
        %v676 = vmul.f32 %v644, 0.16666667
        %v677 = vmul.f32 %v645, 0.16666667
        %v678 = vmul.f32 %v646, 0.16666667
        %v679 = vmul.f32 %v647, 0.16666667
        %v680 = vmul.f32 %v648, 0.16666667
        %v681 = vmul.f32 %v649, 0.16666667
        %v682 = vmul.f32 %v650, 0.16666667
        %v683 = vmul.f32 %v651, 0.16666667
        %v684 = vmul.f32 %v652, 0.16666667
        %v685 = vmul.f32 %v653, 0.16666667
        %v686 = vpack.c.bf16 %v655, %v654
        %v687 = vpack.c.bf16 %v657, %v656
        %v688 = vpack.c.bf16 %v659, %v658
        %v689 = vpack.c.bf16 %v661, %v660
        %v690 = vpack.c.bf16 %v663, %v662
        %v691 = vpack.c.bf16 %v665, %v664
        %v692 = vpack.c.bf16 %v667, %v666
        %v693 = vpack.c.bf16 %v669, %v668
        %v694 = vpack.c.bf16 %v671, %v670
        %v695 = vpack.c.bf16 %v673, %v672
        %v696 = vpack.c.bf16 %v675, %v674
        %v697 = vpack.c.bf16 %v677, %v676
        %v698 = vpack.c.bf16 %v679, %v678
        %v699 = vpack.c.bf16 %v681, %v680
        %v700 = vpack.c.bf16 %v683, %v682
        %v701 = vpack.c.bf16 %v685, %v684
        %v718 = vunpack.c.l.b16 %v686
        %v719 = vunpack.c.h.b16 %v686
        %v720 = vunpack.c.l.b16 %v687
        %v721 = vunpack.c.h.b16 %v687
        %v722 = vunpack.c.l.b16 %v688
        %v723 = vunpack.c.h.b16 %v688
        %v724 = vunpack.c.l.b16 %v689
        %v725 = vunpack.c.h.b16 %v689
        %v726 = vunpack.c.l.b16 %v690
        %v727 = vunpack.c.h.b16 %v690
        %v728 = vunpack.c.l.b16 %v691
        %v729 = vunpack.c.h.b16 %v691
        %v730 = vunpack.c.l.b16 %v692
        %v731 = vunpack.c.h.b16 %v692
        %v732 = vunpack.c.l.b16 %v693
        %v733 = vunpack.c.h.b16 %v693
        %v734 = vunpack.c.l.b16 %v694
        %v735 = vunpack.c.h.b16 %v694
        %v736 = vunpack.c.l.b16 %v695
        %v737 = vunpack.c.h.b16 %v695
        %v738 = vunpack.c.l.b16 %v696
        %v739 = vunpack.c.h.b16 %v696
        %v740 = vunpack.c.l.b16 %v697
        %v741 = vunpack.c.h.b16 %v697
        %v742 = vunpack.c.l.b16 %v698
        %v743 = vunpack.c.h.b16 %v698
        %v744 = vunpack.c.l.b16 %v699
        %v745 = vunpack.c.h.b16 %v699
        %v746 = vunpack.c.l.b16 %v700
        %v747 = vunpack.c.h.b16 %v700
        %v748 = vunpack.c.l.b16 %v701
        %v749 = vunpack.c.h.b16 %v701
        %v750 = vpack.c.b16 %v718, %v718
        %v751 = vpack.c.b16 %v719, %v719
        %v752 = vpack.c.b16 %v720, %v720
        %v753 = vpack.c.b16 %v721, %v721
        %v754 = vpack.c.b16 %v722, %v722
        %v755 = vpack.c.b16 %v723, %v723
        %v756 = vpack.c.b16 %v724, %v724
        %v757 = vpack.c.b16 %v725, %v725
        %v758 = vpack.c.b16 %v726, %v726
        %v759 = vpack.c.b16 %v727, %v727
        %v760 = vpack.c.b16 %v728, %v728
        %v761 = vpack.c.b16 %v729, %v729
        %v762 = vpack.c.b16 %v730, %v730
        %v763 = vpack.c.b16 %v731, %v731
        %v764 = vpack.c.b16 %v732, %v732
        %v765 = vpack.c.b16 %v733, %v733
        %v766 = vpack.c.b16 %v734, %v734
        %v767 = vpack.c.b16 %v735, %v735
        %v768 = vpack.c.b16 %v736, %v736
        %v769 = vpack.c.b16 %v737, %v737
        %v770 = vpack.c.b16 %v738, %v738
        %v771 = vpack.c.b16 %v739, %v739
        %v772 = vpack.c.b16 %v740, %v740
        %v773 = vpack.c.b16 %v741, %v741
        %v774 = vpack.c.b16 %v742, %v742
        %v775 = vpack.c.b16 %v743, %v743
        %v776 = vpack.c.b16 %v744, %v744
        %v777 = vpack.c.b16 %v745, %v745
        %v778 = vpack.c.b16 %v746, %v746
        %v779 = vpack.c.b16 %v747, %v747
        %v780 = vpack.c.b16 %v748, %v748
        %v781 = vpack.c.b16 %v749, %v749
        %814 = vst [vmem:[%s164] sm:$0xf] %v750
        %815 = vst [vmem:[%s164 + $0x4] sm:$0xf] %v751
        %816 = vst [vmem:[%s164 + $0x8] sm:$0xf] %v752
        %817 = vst [vmem:[%s164 + $0xc] sm:$0xf] %v753
        %818 = vst [vmem:[%s164 + $0x10] sm:$0xf] %v754
        %819 = vst [vmem:[%s164 + $0x14] sm:$0xf] %v755
        %820 = vst [vmem:[%s164 + $0x18] sm:$0xf] %v756
        %821 = vst [vmem:[%s164 + $0x1c] sm:$0xf] %v757
        %822 = vst [vmem:[%s164 + $0x20] sm:$0xf] %v758
        %823 = vst [vmem:[%s164 + $0x24] sm:$0xf] %v759
        %824 = vst [vmem:[%s164 + $0x28] sm:$0xf] %v760
        %825 = vst [vmem:[%s164 + $0x2c] sm:$0xf] %v761
        %826 = vst [vmem:[%s164 + $0x30] sm:$0xf] %v762
        %827 = vst [vmem:[%s164 + $0x34] sm:$0xf] %v763
        %828 = vst [vmem:[%s164 + $0x38] sm:$0xf] %v764
        %829 = vst [vmem:[%s164 + $0x3c] sm:$0xf] %v765
        %830 = vst [vmem:[%s164 + $0x40] sm:$0xf] %v766
        %831 = vst [vmem:[%s164 + $0x44] sm:$0xf] %v767
        %832 = vst [vmem:[%s164 + $0x48] sm:$0xf] %v768
        %833 = vst [vmem:[%s164 + $0x4c] sm:$0xf] %v769
        %834 = vst [vmem:[%s164 + $0x50] sm:$0xf] %v770
        %835 = vst [vmem:[%s164 + $0x54] sm:$0xf] %v771
        %836 = vst [vmem:[%s164 + $0x58] sm:$0xf] %v772
        %837 = vst [vmem:[%s164 + $0x5c] sm:$0xf] %v773
        %838 = vst [vmem:[%s164 + $0x60] sm:$0xf] %v774
        %839 = vst [vmem:[%s164 + $0x64] sm:$0xf] %v775
        %840 = vst [vmem:[%s164 + $0x68] sm:$0xf] %v776
        %841 = vst [vmem:[%s164 + $0x6c] sm:$0xf] %v777
        %842 = vst [vmem:[%s164 + $0x70] sm:$0xf] %v778
        %843 = vst [vmem:[%s164 + $0x74] sm:$0xf] %v779
        %844 = vst [vmem:[%s164 + $0x78] sm:$0xf] %v780
        %845 = vst [vmem:[%s164 + $0x7c] sm:$0xf] %v781
        %s846 = sand.u32 %s93, 1
        %s847 = scalar_lea.sflag [#allocation3], %s846
        %s848 = sand.u32 %s93, 1
        %s849 = smul.addr %s848, 128
        %s850 = scalar_lea.vmem [#allocation2], %s849
        // Predicated region
        $region33: #{tpu_custom_call.1} parent=31 // pred_check
          %p851 = pneg %p103
        $region34: #{tpu_custom_call.1} parent=31 // pred_check_branch
          %853 = sbr.rel (%p851) target = $region36
        $region35: #{tpu_custom_call.1} parent=31 // pred_region
          %s854 = smul.u32 32, %s17
          %s856 = ssub.s32 2048, 2048
          %857 = vsyncadd %s847, %s856
          %s858 = smul.addr %s854, 64
          %s859 = scalar_lea.hbm %s3, %s858
          %s860 = sshll.u32 %s850, 4
          %s861 = int_to_ptr.vmem [resolvable:$true] %s860
          %866 = dma.vmem_to_hbm [thread:$0]  %s861, 2048, %s859, %s847, 64, 64, 4
        $region36: #{tpu_custom_call.1} parent=31 // pred_fallthru
          _
      $region32: #{tpu_custom_call.1} parent=5 // pred_fallthru
        _
      %p867 = scmp.le.s32.totalorder 2, %s12
      // Predicated region
      $region37: #{tpu_custom_call.1} parent=5 // pred_check
        %p868 = pneg %p867
      $region38: #{tpu_custom_call.1} parent=5 // pred_check_branch
        %870 = sbr.rel (%p868) target = $region40
      $region39: #{tpu_custom_call.1} parent=5 // pred_region
        %s871 = ssub.s32 %s12, 2
        // Predicated region
        $region41: #{tpu_custom_call.1} parent=39 // pred_check
          %p872 = pneg %p109
        $region42: #{tpu_custom_call.1} parent=39 // pred_check_branch
          %874 = sbr.rel (%p872) target = $region44
        $region43: #{tpu_custom_call.1} parent=39 // pred_region
          %s875 = sand.u32 %s94, 1
          %s876 = scalar_lea.sflag [#allocation3], %s875
          %s877 = sand.u32 %s94, 1
          %s878 = smul.addr %s877, 128
          %s879 = scalar_lea.vmem [#allocation2], %s878
          %880 = dma.done %s876, 2048
        $region44: #{tpu_custom_call.1} parent=39 // pred_fallthru
          _
      $region40: #{tpu_custom_call.1} parent=5 // pred_fallthru
        _
    $region6: #{tpu_custom_call.1} parent=1 // loop_footer
      %s16 = sadd.s32 1, %s12
    $region7: #{tpu_custom_call.1} parent=1 // loop_footer_branch
      %11 = sbr.rel target = $region3
    $region8: #{tpu_custom_call.1} parent=1 // loop_exit
      _
    %881 = vsyncpa [#allocation3], 1
    %s882 = scalar_lea.sflag [#allocation3], 1
    %883 = vsyncpa %s882, 1

</llo_original>
